<compile_context>
chip_gen: v6e
topology: v6e:2x2x1
jax: 0.10.0
libtpu: 0.0.40
codegen_flags: <defaults>
</compile_context>

<pallas_src>
import functools

import jax
import jax.numpy as jnp
from jax.experimental import pallas as pl
from jax.experimental.pallas import tpu as pltpu

_SINGLE_STEP_MAX = 1024   # below this, one grid step (no pipeline overhead)


def _make_kernel(h1_dim, h2_dim, act_dim):
    def policy_kernel(obs_ref, w1_ref, w2_ref, w3_ref, vec_ref, out_ref):
        # obs arrives f32; cast to bf16 in-kernel (MXU inputs bf16, acc f32).
        x = obs_ref[...].astype(jnp.bfloat16)              # (tb, obs_dim)

        b1 = vec_ref[0:1, :h1_dim]                         # (1, h1)  f32
        b2 = vec_ref[1:2, :h2_dim]                         # (1, h2)  f32
        b3 = vec_ref[2:3, :act_dim]                        # (1, act) f32
        scale = vec_ref[3:4, :act_dim]                     # (1, act) f32
        mean = vec_ref[4:5, :act_dim]                      # (1, act) f32

        h1 = jnp.dot(x, w1_ref[...], preferred_element_type=jnp.float32) + b1
        h1 = jnp.maximum(h1, 0.0).astype(jnp.bfloat16)     # activation_func = relu

        h2 = jnp.dot(h1, w2_ref[...], preferred_element_type=jnp.float32) + b2
        h2 = jnp.maximum(h2, 0.0).astype(jnp.bfloat16)     # activation_func = relu

        a = jnp.dot(h2, w3_ref[...], preferred_element_type=jnp.float32) + b3
        a = jnp.tanh(a)                                    # final_activation_func = tanh

        out_ref[...] = scale * a + mean                    # unpadded (tb, act_dim) store

    return policy_kernel


def prepare_params(params):
    """One-time parameter prep (call at load time, reuse across forward calls)."""
    w1, b1, w2, b2, w3, b3, scale, mean = params
    h1_dim = w1.shape[1]
    h2_dim = w2.shape[1]
    act_dim = w3.shape[1]

    # Pack b1 / b2 / b3 / scale / mean into one replicated f32 array
    # (fewer DMA descriptors / resident blocks).
    vdim = max(h1_dim, h2_dim, act_dim)
    vec = jnp.zeros((5, vdim), jnp.float32)
    vec = vec.at[0, :h1_dim].set(b1.reshape(-1))
    vec = vec.at[1, :h2_dim].set(b2.reshape(-1))
    vec = vec.at[2, :act_dim].set(b3.reshape(-1))
    vec = vec.at[3, :act_dim].set(scale.reshape(-1))
    vec = vec.at[4, :act_dim].set(mean.reshape(-1))

    # bf16 on the HBM-heavy weight streams; accumulation stays f32 in-kernel.
    return (w1.astype(jnp.bfloat16),
            w2.astype(jnp.bfloat16),
            w3.astype(jnp.bfloat16),
            vec)


def _pick_tile(B, batch_tile):
    """Batch tile: single step for small B; >=2 even, balanced steps otherwise."""
    if B <= _SINGLE_STEP_MAX:
        return B                                    # one grid step, no overhead
    n_steps = max(2, -(-B // batch_tile))
    if n_steps % 2:                                 # even step count -> balanced
        n_steps += 1                                # across v7x's 2 TensorCores
    tb = -(-B // n_steps)
    tb = ((tb + 15) // 16) * 16                     # bf16 sublane packing
    return min(tb, batch_tile)


@functools.partial(jax.jit, static_argnames=("batch_tile",))
def deterministic_policy_forward(obs, prepared, *, batch_tile=4096):
    """Forward pass. `prepared` comes from prepare_params()."""
    assert batch_tile % 16 == 0, "batch_tile must be a multiple of 16"
    w1_bf, w2_bf, w3_bf, vec = prepared
    B, obs_dim = obs.shape
    h1_dim = w1_bf.shape[1]
    h2_dim = w2_bf.shape[1]
    act_dim = w3_bf.shape[1]
    vdim = vec.shape[1]

    tb = _pick_tile(B, batch_tile)
    grid = (pl.cdiv(B, tb),)

    rep = lambda i: (0, 0)        # replicated block: resident across grid steps

    cost = pl.CostEstimate(
        flops=2 * B * (obs_dim * h1_dim + h1_dim * h2_dim + h2_dim * act_dim),
        transcendentals=B * act_dim,
        bytes_accessed=(B * obs_dim * 4 + B * act_dim * 4
                        + 2 * (obs_dim * h1_dim + h1_dim * h2_dim + h2_dim * act_dim)
                        + 5 * vdim * 4),
    )

    out = pl.pallas_call(
        _make_kernel(h1_dim, h2_dim, act_dim),
        out_shape=jax.ShapeDtypeStruct((B, act_dim), jnp.float32),
        grid_spec=pltpu.PrefetchScalarGridSpec(
            num_scalar_prefetch=0,
            grid=grid,
            in_specs=[
                pl.BlockSpec((tb, obs_dim), lambda i: (i, 0)),   # obs (f32, batch-tiled)
                pl.BlockSpec((obs_dim, h1_dim), rep),            # W1 (bf16)
                pl.BlockSpec((h1_dim, h2_dim), rep),             # W2 (bf16)
                pl.BlockSpec((h2_dim, act_dim), rep),            # W3 (bf16)
                pl.BlockSpec((5, vdim), rep),                    # packed b1/b2/b3/scale/mean
            ],
            out_specs=pl.BlockSpec((tb, act_dim), lambda i: (i, 0)),
        ),
        compiler_params=pltpu.CompilerParams(
            # Parallel batch axis -> shards grid steps across v7x's 2 TCs.
            dimension_semantics=("parallel",),
        ),
        cost_estimate=cost,
        # VMEM footprint at tb=4096 is only a few MiB double-buffered: well
        # inside the scoped default on v5e/v6e (and on v7x's 64 MiB VMEM).
    )(obs, w1_bf, w2_bf, w3_bf, vec)

    return out


def make_params(key, obs_dim, hidden_sizes, act_dim, act_low, act_high):
    """Deterministic synthetic parameters (shapes mirror PlainMLP's Linears)."""
    sizes = [obs_dim] + list(hidden_sizes) + [act_dim]
    keys = jax.random.split(key, 2 * (len(sizes) - 1))
    params = []
    for j in range(len(sizes) - 1):
        fan_in, fan_out = sizes[j], sizes[j + 1]
        bound = 1.0 / jnp.sqrt(jnp.float32(fan_in))
        w = jax.random.uniform(keys[2 * j], (fan_in, fan_out), jnp.float32,
                               minval=-bound, maxval=bound)
        b = jax.random.uniform(keys[2 * j + 1], (1, fan_out), jnp.float32,
                               minval=-bound, maxval=bound)
        params += [w, b]
    scale = ((act_high - act_low) / 2.0).reshape(1, act_dim).astype(jnp.float32)
    mean = ((act_high + act_low) / 2.0).reshape(1, act_dim).astype(jnp.float32)
    return tuple(params) + (scale, mean)


def reference_forward(obs, params):
    """Pure-JAX reference matching the kernel's bf16-weight / f32-accumulate path."""
    w1, b1, w2, b2, w3, b3, scale, mean = params
    bf = jnp.bfloat16
    x = obs.astype(bf)
    h = jnp.dot(x, w1.astype(bf), preferred_element_type=jnp.float32) + b1
    h = jnp.maximum(h, 0.0).astype(bf)
    h = jnp.dot(h, w2.astype(bf), preferred_element_type=jnp.float32) + b2
    h = jnp.maximum(h, 0.0).astype(bf)
    a = jnp.tanh(jnp.dot(h, w3.astype(bf), preferred_element_type=jnp.float32) + b3)
    return scale * a + mean


if __name__ == "__main__":
    key = jax.random.PRNGKey(0)
    k_obs, k_obs2, k_params = jax.random.split(key, 3)

    # Small shapes consistent with the module (vector obs -> MLP policy).
    obs_dim = 24
    hidden_sizes = (32, 32)
    act_dim = 6

    act_low = -2.0 * jnp.ones((act_dim,), jnp.float32)
    act_high = 2.0 * jnp.ones((act_dim,), jnp.float32)
    params = make_params(k_params, obs_dim, hidden_sizes, act_dim, act_low, act_high)
    prepared = prepare_params(params)   # one-time prep, reused across calls

    # Case 1: tiny rollout batch -> single grid step, unpadded narrow output.
    batch = 8
    obs = jax.random.normal(k_obs, (batch, obs_dim), dtype=jnp.float32)
    out = jax.block_until_ready(deterministic_policy_forward(obs, prepared))
    ref = reference_forward(obs, params)
    assert out.shape == (batch, act_dim)
    assert jnp.allclose(out, ref, atol=1e-2, rtol=1e-2), "mismatch vs reference (B=8)"

    # Case 2: B > 1024 -> >=2 balanced grid steps (v7x) + final partial tile.
    batch2 = 2000
    obs2 = jax.random.normal(k_obs2, (batch2, obs_dim), dtype=jnp.float32)
    out2 = jax.block_until_ready(deterministic_policy_forward(obs2, prepared))
    ref2 = reference_forward(obs2, params)
    assert out2.shape == (batch2, act_dim)
    assert jnp.allclose(out2, ref2, atol=1e-2, rtol=1e-2), "mismatch vs reference (B=2000)"

    print("KERNEL_OK")
</pallas_src>

<mosaic_0001>
module attributes {stable_mosaic.version = 11 : i64} {
  func.func @policy_kernel(%arg0: i32, %arg1: memref<8x24xf32, #tpu.memory_space<vmem>>, %arg2: memref<24x32xbf16, #tpu.memory_space<vmem>>, %arg3: memref<32x32xbf16, #tpu.memory_space<vmem>>, %arg4: memref<32x6xbf16, #tpu.memory_space<vmem>>, %arg5: memref<5x32xf32, #tpu.memory_space<vmem>>, %arg6: memref<8x6xf32, #tpu.memory_space<vmem>>) attributes {dimension_semantics = [#tpu.dimension_semantics<parallel>], iteration_bounds = array<i64: 1>, scalar_prefetch = 0 : i64, scratch_operands = 0 : i64, tpu.core_type = #tpu.core_type<tc>, window_params = [{transform_indices = @transform_0, window_bounds = array<i64: 8, 24>}, {pipeline_mode = #tpu.pipeline_mode<synchronous>, transform_indices = @transform_1, window_bounds = array<i64: 24, 32>}, {pipeline_mode = #tpu.pipeline_mode<synchronous>, transform_indices = @transform_2, window_bounds = array<i64: 32, 32>}, {pipeline_mode = #tpu.pipeline_mode<synchronous>, transform_indices = @transform_3, window_bounds = array<i64: 32, 6>}, {pipeline_mode = #tpu.pipeline_mode<synchronous>, transform_indices = @transform_4, window_bounds = array<i64: 5, 32>}, {transform_indices = @transform_5, window_bounds = array<i64: 8, 6>}]} {
    %c0 = arith.constant 0 : index
    %c0_0 = arith.constant 0 : index
    %0 = vector.load %arg1[%c0, %c0_0] : memref<8x24xf32, #tpu.memory_space<vmem>>, vector<8x24xf32>
    %1 = arith.truncf %0 : vector<8x24xf32> to vector<8x24xbf16>
    %c0_1 = arith.constant 0 : index
    %c0_2 = arith.constant 0 : index
    %2 = vector.load %arg5[%c0_1, %c0_2] : memref<5x32xf32, #tpu.memory_space<vmem>>, vector<1x32xf32>
    %c1 = arith.constant 1 : index
    %c0_3 = arith.constant 0 : index
    %3 = vector.load %arg5[%c1, %c0_3] : memref<5x32xf32, #tpu.memory_space<vmem>>, vector<1x32xf32>
    %c2 = arith.constant 2 : index
    %c0_4 = arith.constant 0 : index
    %4 = vector.load %arg5[%c2, %c0_4] : memref<5x32xf32, #tpu.memory_space<vmem>>, vector<1x6xf32>
    %c3 = arith.constant 3 : index
    %c0_5 = arith.constant 0 : index
    %5 = vector.load %arg5[%c3, %c0_5] : memref<5x32xf32, #tpu.memory_space<vmem>>, vector<1x6xf32>
    %c4 = arith.constant 4 : index
    %c0_6 = arith.constant 0 : index
    %6 = vector.load %arg5[%c4, %c0_6] : memref<5x32xf32, #tpu.memory_space<vmem>>, vector<1x6xf32>
    %c0_7 = arith.constant 0 : index
    %c0_8 = arith.constant 0 : index
    %7 = vector.load %arg2[%c0_7, %c0_8] : memref<24x32xbf16, #tpu.memory_space<vmem>>, vector<24x32xbf16>
    %cst = arith.constant dense<0.000000e+00> : vector<8x32xf32>
    %8 = tpu.matmul %1, %7, %cst {dimension_numbers = #tpu.dot_dimension_numbers<[1], [0], [0], [1], [0, 0, 1, 1], [], []>} : vector<8x24xbf16>, vector<24x32xbf16>, vector<8x32xf32> -> vector<8x32xf32>
    %9 = vector.broadcast %2 : vector<1x32xf32> to vector<8x32xf32>
    %10 = arith.addf %8, %9 : vector<8x32xf32>
    %cst_9 = arith.constant 0.000000e+00 : f32
    %11 = vector.broadcast %cst_9 : f32 to vector<8x32xf32>
    %12 = arith.maximumf %10, %11 : vector<8x32xf32>
    %13 = arith.truncf %12 : vector<8x32xf32> to vector<8x32xbf16>
    %c0_10 = arith.constant 0 : index
    %c0_11 = arith.constant 0 : index
    %14 = vector.load %arg3[%c0_10, %c0_11] : memref<32x32xbf16, #tpu.memory_space<vmem>>, vector<32x32xbf16>
    %cst_12 = arith.constant dense<0.000000e+00> : vector<8x32xf32>
    %15 = tpu.matmul %13, %14, %cst_12 {dimension_numbers = #tpu.dot_dimension_numbers<[1], [0], [0], [1], [0, 0, 1, 1], [], []>} : vector<8x32xbf16>, vector<32x32xbf16>, vector<8x32xf32> -> vector<8x32xf32>
    %16 = vector.broadcast %3 : vector<1x32xf32> to vector<8x32xf32>
    %17 = arith.addf %15, %16 : vector<8x32xf32>
    %cst_13 = arith.constant 0.000000e+00 : f32
    %18 = vector.broadcast %cst_13 : f32 to vector<8x32xf32>
    %19 = arith.maximumf %17, %18 : vector<8x32xf32>
    %20 = arith.truncf %19 : vector<8x32xf32> to vector<8x32xbf16>
    %c0_14 = arith.constant 0 : index
    %c0_15 = arith.constant 0 : index
    %21 = vector.load %arg4[%c0_14, %c0_15] : memref<32x6xbf16, #tpu.memory_space<vmem>>, vector<32x6xbf16>
    %cst_16 = arith.constant dense<0.000000e+00> : vector<8x6xf32>
    %22 = tpu.matmul %20, %21, %cst_16 {dimension_numbers = #tpu.dot_dimension_numbers<[1], [0], [0], [1], [0, 0, 1, 1], [], []>} : vector<8x32xbf16>, vector<32x6xbf16>, vector<8x6xf32> -> vector<8x6xf32>
    %23 = vector.broadcast %4 : vector<1x6xf32> to vector<8x6xf32>
    %24 = arith.addf %22, %23 : vector<8x6xf32>
    %25 = math.tanh %24 : vector<8x6xf32>
    %26 = vector.broadcast %5 : vector<1x6xf32> to vector<8x6xf32>
    %27 = arith.mulf %26, %25 : vector<8x6xf32>
    %28 = vector.broadcast %6 : vector<1x6xf32> to vector<8x6xf32>
    %29 = arith.addf %27, %28 : vector<8x6xf32>
    %c0_17 = arith.constant 0 : index
    %c0_18 = arith.constant 0 : index
    %30 = vector.load %arg6[%c0_17, %c0_18] : memref<8x6xf32, #tpu.memory_space<vmem>>, vector<8x6xf32>
    tpu.vector_store %arg6[%c0_17, %c0_18], %29 {strides = array<i32>} : memref<8x6xf32, #tpu.memory_space<vmem>>, vector<8x6xf32>,
    return
  }
  func.func @transform_0(%arg0: i32) -> (i32, i32) {
    %c0_i32 = arith.constant 0 : i32
    %c0_i32_0 = arith.constant 0 : i32
    return %arg0, %c0_i32 : i32, i32
  }
  func.func @transform_1(%arg0: i32) -> (i32, i32) {
    %c0_i32 = arith.constant 0 : i32
    %c0_i32_0 = arith.constant 0 : i32
    %c0_i32_1 = arith.constant 0 : i32
    return %c0_i32, %c0_i32_0 : i32, i32
  }
  func.func @transform_2(%arg0: i32) -> (i32, i32) {
    %c0_i32 = arith.constant 0 : i32
    %c0_i32_0 = arith.constant 0 : i32
    %c0_i32_1 = arith.constant 0 : i32
    return %c0_i32, %c0_i32_0 : i32, i32
  }
  func.func @transform_3(%arg0: i32) -> (i32, i32) {
    %c0_i32 = arith.constant 0 : i32
    %c0_i32_0 = arith.constant 0 : i32
    %c0_i32_1 = arith.constant 0 : i32
    return %c0_i32, %c0_i32_0 : i32, i32
  }
  func.func @transform_4(%arg0: i32) -> (i32, i32) {
    %c0_i32 = arith.constant 0 : i32
    %c0_i32_0 = arith.constant 0 : i32
    %c0_i32_1 = arith.constant 0 : i32
    return %c0_i32, %c0_i32_0 : i32, i32
  }
  func.func @transform_5(%arg0: i32) -> (i32, i32) {
    %c0_i32 = arith.constant 0 : i32
    %c0_i32_0 = arith.constant 0 : i32
    return %arg0, %c0_i32 : i32, i32
  }
}

</mosaic_0001>

<llo_original>
// kernel: deterministic_policy_forward.1
$region0: #{deterministic_policy_forward.1}
  #allocation0 [shape = 'u32[]', space=smem, size = 0x4, offset = 0x4, fixed_abs, tag = 'smem constant byte address 0x4 - core index']
  #allocation1 [shape = 'u32[144,128]{1,0:T(1,128)}', space=vmem, size = 0x12000, scoped, tag = 'internal scratch']
  %s0 = inlined_call_operand.hbm [shape: f32[8,24], index: 0, kind: input, shape index: {}]
  %s1 = inlined_call_operand.hbm [shape: bf16[24,32], index: 1, kind: input, shape index: {}]
  %s2 = inlined_call_operand.vmem [shape: bf16[32,32], index: 2, kind: input, shape index: {}]
  %s3 = inlined_call_operand.vmem [shape: bf16[32,6], index: 3, kind: input, shape index: {}]
  %s4 = inlined_call_operand.vmem [shape: f32[5,32], index: 4, kind: input, shape index: {}]
  %s5 = inlined_call_operand.hbm [shape: f32[8,6], index: 5, kind: output, shape index: {}]
  %s6 = sld [smem:[#allocation0]]
  $region38: #{deterministic_policy_forward.1} parent=0
    _
  %s8 = ssub.s32 1, %s6
  %s9 = scalar_select 0, %s8, %s6
  $region1: #{deterministic_policy_forward.1} parent=0
    #allocation2 [shape = 'u8[4096]{0}', space=vmem, size = 0x1000, scoped, tag = 'input window, operand 0, single buffered']
    #allocation3 [shape = 's32[1]{0}', space=sflag, size = 0x4, scoped, tag = 'scoped memory for deterministic_policy_forward.1']
    #allocation4 [shape = 's32[1]{0}', space=sflag, size = 0x4, scoped, tag = 'scoped memory for deterministic_policy_forward.1']
    #allocation5 [shape = 'u8[6144]{0}', space=vmem, size = 0x1800, scoped, tag = 'input window, operand 1, single buffered']
    #allocation6 [shape = 's32[1]{0}', space=sflag, size = 0x4, scoped, tag = 'scoped memory for deterministic_policy_forward.1']
    #allocation7 [shape = 'u8[4096]{0}', space=vmem, size = 0x1000, scoped, tag = 'output window, operand 0, single buffered']
    %10 = vsyncpa [#allocation3], 0
    %11 = vsyncpa [#allocation6], 0
    %12 = vsyncpa [#allocation4], 0
    // Predicated region
    $region2: #{deterministic_policy_forward.1} parent=1 // pred_check
      _
    $region3: #{deterministic_policy_forward.1} parent=1 // pred_check_branch
      %14 = sbr.rel (0) target = $region5
    $region4: #{deterministic_policy_forward.1} parent=1 // pred_region
      %s16 = ssub.s32 128, 128
      %17 = vsyncadd [#allocation3], %s16
      %s19 = sshll.u32 [#allocation2], 4
      %s20 = int_to_ptr.vmem [resolvable:$true] %s19
      %22 = dma.hbm_to_vmem [thread:$0]  %s0, 128, %s20, [#allocation3]
    $region5: #{deterministic_policy_forward.1} parent=1 // pred_fallthru
      _
    // Predicated region
    $region6: #{deterministic_policy_forward.1} parent=1 // pred_check
      _
    $region7: #{deterministic_policy_forward.1} parent=1 // pred_check_branch
      %24 = sbr.rel (0) target = $region9
    $region8: #{deterministic_policy_forward.1} parent=1 // pred_region
      %s26 = ssub.s32 192, 192
      %27 = vsyncadd [#allocation6], %s26
      %s28 = sshll.u32 [#allocation5], 4
      %s29 = int_to_ptr.vmem [resolvable:$true] %s28
      %34 = dma.hbm_to_vmem [thread:$0]  %s1, 192, %s29, [#allocation6], 64, 64, 4
    $region9: #{deterministic_policy_forward.1} parent=1 // pred_fallthru
      _
    // Predicated region
    $region10: #{deterministic_policy_forward.1} parent=1 // pred_check
      _
    $region11: #{deterministic_policy_forward.1} parent=1 // pred_check_branch
      %36 = sbr.rel (0) target = $region13
    $region12: #{deterministic_policy_forward.1} parent=1 // pred_region
      _
    $region13: #{deterministic_policy_forward.1} parent=1 // pred_fallthru
      _
    // Predicated region
    $region14: #{deterministic_policy_forward.1} parent=1 // pred_check
      _
    $region15: #{deterministic_policy_forward.1} parent=1 // pred_check_branch
      %38 = sbr.rel (0) target = $region17
    $region16: #{deterministic_policy_forward.1} parent=1 // pred_region
      _
    $region17: #{deterministic_policy_forward.1} parent=1 // pred_fallthru
      _
    // Predicated region
    $region18: #{deterministic_policy_forward.1} parent=1 // pred_check
      _
    $region19: #{deterministic_policy_forward.1} parent=1 // pred_check_branch
      %40 = sbr.rel (0) target = $region21
    $region20: #{deterministic_policy_forward.1} parent=1 // pred_region
      _
    $region21: #{deterministic_policy_forward.1} parent=1 // pred_fallthru
      _
    // Predicated region
    $region22: #{deterministic_policy_forward.1} parent=1 // pred_check
      _
    $region23: #{deterministic_policy_forward.1} parent=1 // pred_check_branch
      %42 = sbr.rel (0) target = $region25
    $region24: #{deterministic_policy_forward.1} parent=1 // pred_region
      %43 = dma.done [#allocation3], 128
    $region25: #{deterministic_policy_forward.1} parent=1 // pred_fallthru
      _
    // Predicated region
    $region26: #{deterministic_policy_forward.1} parent=1 // pred_check
      _
    $region27: #{deterministic_policy_forward.1} parent=1 // pred_check_branch
      %45 = sbr.rel (0) target = $region29
    $region28: #{deterministic_policy_forward.1} parent=1 // pred_region
      %46 = dma.done [#allocation6], 192
    $region29: #{deterministic_policy_forward.1} parent=1 // pred_fallthru
      _
    %v48 = vld [vmem:[#allocation2] sm:$0xff]
    %v49 = vpack.c.bf16 %v48, %v48
    %v50 = vld [vmem:[%s4] sm:$0x1]
    %v51 = vld [vmem:[%s4 + $0x1] sm:$0x1]
    %v52 = vld [vmem:[%s4 + $0x2] sm:$0x1]
    %v53 = vld [vmem:[%s4 + $0x3] sm:$0x1]
    %v54 = vld [vmem:[%s4 + $0x4] sm:$0x1]
    %v55 = vld [vmem:[#allocation5] sm:$0xf]
    %v56 = vld [vmem:[#allocation5 + $0x4] sm:$0xf]
    %v57 = vld [vmem:[#allocation5 + $0x8] sm:$0xf]
    %v58 = vlaneseq
    %v59 = vshrl.u32 %v58, 7
    %v60 = vsub.s32 0, %v59
    %v61 = vrot.slane %v50, %v60
    %v65 = vunpack.c.l.b16 %v55
    %v66 = vunpack.c.l.b16 %v56
    %v67 = vunpack.c.l.b16 %v57
    %v68 = vpack.c.b16 %v66, %v65
    %v69 = vpack.c.b16 %v67, %v67
    %vm71 = vcmask 195584
    %v73 = vsel %vm71, %v49, 0
    %vm75 = vcmask 1043456
    %v77 = vsel %vm75, %v69, 0
    %79 = vmatprep.subr.bf16.mxu0 0
    %80 = vmatpush1.bf16.msra.mxu0 0
    %81 = vmatprep.subr.bf16.mxu0 0
    %82 = vmatpush1.bf16.msra.mxu0 0
    %83 = vmatprep.subr.bf16.mxu0 0
    %84 = vmatpush1.bf16.msra.mxu0 0
    %85 = vmatprep.subr.bf16.mxu0 0
    %86 = vmatpush1.bf16.msra.mxu0 0
    %87 = vmatprep.subr.bf16.mxu0 0
    %88 = vmatpush1.bf16.msra.mxu0 0
    %89 = vmatprep.subr.bf16.mxu0 0
    %90 = vmatpush1.bf16.msra.mxu0 0
    %91 = vmatprep.subr.bf16.mxu0 0
    %92 = vmatpush1.bf16.msra.mxu0 %v77
    %93 = vmatprep.subr.bf16.mxu0 0
    %94 = vmatpush1.bf16.msra.mxu0 %v68
    %95 = vmatprep.subr.bf16.mxu0 0
    %96 = vmatpush2.bf16.msra.mxu0 0
    %97 = vmatprep.subr.bf16.mxu0 0
    %98 = vmatpush2.bf16.msra.mxu0 0
    %99 = vmatprep.subr.bf16.mxu0 0
    %100 = vmatpush2.bf16.msra.mxu0 0
    %101 = vmatprep.subr.bf16.mxu0 0
    %102 = vmatpush2.bf16.msra.mxu0 0
    %103 = vmatprep.subr.bf16.mxu0 0
    %104 = vmatpush2.bf16.msra.mxu0 0
    %105 = vmatprep.subr.bf16.mxu0 0
    %106 = vmatpush2.bf16.msra.mxu0 0
    %107 = vmatprep.subr.bf16.mxu0 0
    %108 = vmatpush2.bf16.msra.mxu0 0
    %109 = vmatprep.subr.bf16.mxu0 0
    %110 = vmatpush2.bf16.msra.mxu0 0
    %111 = vmatprep.mubr.bf16.mxu0 0
    %112 = vmatmul.mubr.bf16.gmra.mxu0 %v73
    %v113 = vpop.f32.mrf.mxu0
    %v114 = vadd.f32 %v61, %v113
    %v115 = vpop.f32.mrf.mxu0
    %v116 = vpop.f32.mrf.mxu0
    %v117 = vpop.f32.mrf.mxu0
    %118 = vdwg.mxu0
    %v119 = vmax.f32 %v114, 0.0
    %v120 = vpack.c.bf16 %v119, %v119
    %v121 = vld [vmem:[%s2] sm:$0xf]
    %v122 = vld [vmem:[%s2 + $0x4] sm:$0xf]
    %v123 = vld [vmem:[%s2 + $0x8] sm:$0xf]
    %v124 = vld [vmem:[%s2 + $0xc] sm:$0xf]
    %v125 = vlaneseq
    %v126 = vshrl.u32 %v125, 7
    %v127 = vsub.s32 0, %v126
    %v128 = vrot.slane %v51, %v127
    %v133 = vunpack.c.l.b16 %v121
    %v134 = vunpack.c.l.b16 %v122
    %v135 = vunpack.c.l.b16 %v123
    %v136 = vunpack.c.l.b16 %v124
    %v137 = vpack.c.b16 %v134, %v133
    %v138 = vpack.c.b16 %v136, %v135
    %vm141 = vcmask 261120
    %v143 = vsel %vm141, %v120, 0
    %145 = vmatprep.subr.bf16.mxu0 0
    %146 = vmatpush1.bf16.msra.mxu0 0
    %147 = vmatprep.subr.bf16.mxu0 0
    %148 = vmatpush1.bf16.msra.mxu0 0
    %149 = vmatprep.subr.bf16.mxu0 0
    %150 = vmatpush1.bf16.msra.mxu0 0
    %151 = vmatprep.subr.bf16.mxu0 0
    %152 = vmatpush1.bf16.msra.mxu0 0
    %153 = vmatprep.subr.bf16.mxu0 0
    %154 = vmatpush1.bf16.msra.mxu0 0
    %155 = vmatprep.subr.bf16.mxu0 0
    %156 = vmatpush1.bf16.msra.mxu0 0
    %157 = vmatprep.subr.bf16.mxu0 0
    %158 = vmatpush1.bf16.msra.mxu0 %v138
    %159 = vmatprep.subr.bf16.mxu0 0
    %160 = vmatpush1.bf16.msra.mxu0 %v137
    %161 = vmatprep.subr.bf16.mxu0 0
    %162 = vmatpush2.bf16.msra.mxu0 0
    %163 = vmatprep.subr.bf16.mxu0 0
    %164 = vmatpush2.bf16.msra.mxu0 0
    %165 = vmatprep.subr.bf16.mxu0 0
    %166 = vmatpush2.bf16.msra.mxu0 0
    %167 = vmatprep.subr.bf16.mxu0 0
    %168 = vmatpush2.bf16.msra.mxu0 0
    %169 = vmatprep.subr.bf16.mxu0 0
    %170 = vmatpush2.bf16.msra.mxu0 0
    %171 = vmatprep.subr.bf16.mxu0 0
    %172 = vmatpush2.bf16.msra.mxu0 0
    %173 = vmatprep.subr.bf16.mxu0 0
    %174 = vmatpush2.bf16.msra.mxu0 0
    %175 = vmatprep.subr.bf16.mxu0 0
    %176 = vmatpush2.bf16.msra.mxu0 0
    %177 = vmatprep.mubr.bf16.mxu0 0
    %178 = vmatmul.mubr.bf16.gmra.mxu0 %v143
    %v179 = vpop.f32.mrf.mxu0
    %v180 = vadd.f32 %v128, %v179
    %v181 = vpop.f32.mrf.mxu0
    %v182 = vpop.f32.mrf.mxu0
    %v183 = vpop.f32.mrf.mxu0
    %184 = vdwg.mxu0
    %v185 = vmax.f32 %v180, 0.0
    %v186 = vpack.c.bf16 %v185, %v185
    %v187 = vld [vmem:[%s3] sm:$0xf]
    %v188 = vld [vmem:[%s3 + $0x4] sm:$0xf]
    %v189 = vld [vmem:[%s3 + $0x8] sm:$0xf]
    %v190 = vld [vmem:[%s3 + $0xc] sm:$0xf]
    %v191 = vlaneseq
    %v192 = vshrl.u32 %v191, 7
    %v193 = vsub.s32 0, %v192
    %v194 = vrot.slane %v52, %v193
    %v199 = vunpack.c.l.b16 %v187
    %v200 = vunpack.c.l.b16 %v188
    %v201 = vunpack.c.l.b16 %v189
    %v202 = vunpack.c.l.b16 %v190
    %v203 = vpack.c.b16 %v200, %v199
    %v204 = vpack.c.b16 %v202, %v201
    %v208 = vsel %vm141, %v186, 0
    %210 = vmatprep.subr.bf16.mxu0 0
    %211 = vmatpush1.bf16.msra.mxu0 0
    %212 = vmatprep.subr.bf16.mxu0 0
    %213 = vmatpush1.bf16.msra.mxu0 0
    %214 = vmatprep.subr.bf16.mxu0 0
    %215 = vmatpush1.bf16.msra.mxu0 0
    %216 = vmatprep.subr.bf16.mxu0 0
    %217 = vmatpush1.bf16.msra.mxu0 0
    %218 = vmatprep.subr.bf16.mxu0 0
    %219 = vmatpush1.bf16.msra.mxu0 0
    %220 = vmatprep.subr.bf16.mxu0 0
    %221 = vmatpush1.bf16.msra.mxu0 0
    %222 = vmatprep.subr.bf16.mxu0 0
    %223 = vmatpush1.bf16.msra.mxu0 %v204
    %224 = vmatprep.subr.bf16.mxu0 0
    %225 = vmatpush1.bf16.msra.mxu0 %v203
    %226 = vmatprep.subr.bf16.mxu0 0
    %227 = vmatpush2.bf16.msra.mxu0 0
    %228 = vmatprep.subr.bf16.mxu0 0
    %229 = vmatpush2.bf16.msra.mxu0 0
    %230 = vmatprep.subr.bf16.mxu0 0
    %231 = vmatpush2.bf16.msra.mxu0 0
    %232 = vmatprep.subr.bf16.mxu0 0
    %233 = vmatpush2.bf16.msra.mxu0 0
    %234 = vmatprep.subr.bf16.mxu0 0
    %235 = vmatpush2.bf16.msra.mxu0 0
    %236 = vmatprep.subr.bf16.mxu0 0
    %237 = vmatpush2.bf16.msra.mxu0 0
    %238 = vmatprep.subr.bf16.mxu0 0
    %239 = vmatpush2.bf16.msra.mxu0 0
    %240 = vmatprep.subr.bf16.mxu0 0
    %241 = vmatpush2.bf16.msra.mxu0 0
    %242 = vmatprep.mubr.bf16.mxu0 0
    %243 = vmatmul.mubr.bf16.gmra.mxu0 %v208
    %v244 = vpop.f32.mrf.mxu0
    %v245 = vadd.f32 %v194, %v244
    %v246 = vpop.f32.mrf.mxu0
    %v247 = vpop.f32.mrf.mxu0
    %v248 = vpop.f32.mrf.mxu0
    %249 = vdwg.mxu0
    %v250 = vtanh.pop %v245
    %v251 = vlaneseq
    %v252 = vshrl.u32 %v251, 7
    %v253 = vsub.s32 0, %v252
    %v254 = vrot.slane %v53, %v253
    %v255 = vmul.f32 %v254, %v250
    %v256 = vlaneseq
    %v257 = vshrl.u32 %v256, 7
    %v258 = vsub.s32 0, %v257
    %v259 = vrot.slane %v54, %v258
    %v260 = vadd.f32 %v255, %v259
    %vm261 = vcmask 48128
    %262 = vst.msk [vmem:[#allocation7] sm:$0xff] %vm261, %v260
    // Predicated region
    $region30: #{deterministic_policy_forward.1} parent=1 // pred_check
      _
    $region31: #{deterministic_policy_forward.1} parent=1 // pred_check_branch
      %264 = sbr.rel (0) target = $region33
    $region32: #{deterministic_policy_forward.1} parent=1 // pred_region
      %s266 = ssub.s32 128, 128
      %267 = vsyncadd [#allocation4], %s266
      %s269 = sshll.u32 [#allocation7], 4
      %s270 = int_to_ptr.vmem [resolvable:$true] %s269
      %272 = dma.vmem_to_hbm [thread:$0]  %s270, 128, %s5, [#allocation4]
    $region33: #{deterministic_policy_forward.1} parent=1 // pred_fallthru
      _
    // Predicated region
    $region34: #{deterministic_policy_forward.1} parent=1 // pred_check
      _
    $region35: #{deterministic_policy_forward.1} parent=1 // pred_check_branch
      %274 = sbr.rel (0) target = $region37
    $region36: #{deterministic_policy_forward.1} parent=1 // pred_region
      %275 = dma.done [#allocation4], 128
    $region37: #{deterministic_policy_forward.1} parent=1 // pred_fallthru
      _
    %276 = vsyncpa [#allocation3], 1
    %277 = vsyncpa [#allocation6], 1
    %278 = vsyncpa [#allocation4], 1

</llo_original>
